<compile_context>
chip_gen: v7x
topology: tpu7x:2x2x1
jax: 0.10.0
libtpu: 0.0.40
codegen_flags: <defaults>
</compile_context>

<pallas_src>
import functools
import math

import jax
import jax.numpy as jnp
from jax.experimental import pallas as pl
from jax.experimental.pallas import tpu as pltpu

_LANE = 128
_SUBLANE = 8


def _round_up(x, m):
    return ((x + m - 1) // m) * m


def _tile_rows_cap():
    """Max tile height (sublanes) that fits each generation's scoped-VMEM default."""
    try:
        kind = jax.devices()[0].device_kind.lower()
    except Exception:
        return 1024
    if ('v6' in kind) or ('v7' in kind):
        return 2048   # 32 MiB scoped default; ~18 MiB used with double buffering
    return 1024       # v5e and older: 16 MiB scoped default; ~9 MiB used


def _compute_loss_tile(p_ref, t_ref, loss_type):
    """Dense per-box loss on one (tile_rows, 128) tile. Inputs are (4, R, 128) refs."""
    f32 = jnp.float32
    p_cx = p_ref[0].astype(f32)
    p_cy = p_ref[1].astype(f32)
    p_w = p_ref[2].astype(f32)
    p_h = p_ref[3].astype(f32)
    t_cx = t_ref[0].astype(f32)
    t_cy = t_ref[1].astype(f32)
    t_w = t_ref[2].astype(f32)
    t_h = t_ref[3].astype(f32)

    tl_x = jnp.maximum(p_cx - 0.5 * p_w, t_cx - 0.5 * t_w)
    tl_y = jnp.maximum(p_cy - 0.5 * p_h, t_cy - 0.5 * t_h)
    br_x = jnp.minimum(p_cx + 0.5 * p_w, t_cx + 0.5 * t_w)
    br_y = jnp.minimum(p_cy + 0.5 * p_h, t_cy + 0.5 * t_h)

    area_p = p_w * p_h
    area_g = t_w * t_h
    en = ((tl_x < br_x) & (tl_y < br_y)).astype(f32)
    w_i = br_x - tl_x
    h_i = br_y - tl_y
    area_i = w_i * h_i * en
    area_u = area_p + area_g - area_i
    iou = area_i * pl.reciprocal(area_u + 1e-16, approx=True)

    if loss_type == 'iou':
        return 1.0 - iou * iou

    # Enclosing box (shared by giou / ciou / ciou_log).
    c_tl_x = jnp.minimum(p_cx - 0.5 * p_w, t_cx - 0.5 * t_w)
    c_tl_y = jnp.minimum(p_cy - 0.5 * p_h, t_cy - 0.5 * t_h)
    c_br_x = jnp.maximum(p_cx + 0.5 * p_w, t_cx + 0.5 * t_w)
    c_br_y = jnp.maximum(p_cy + 0.5 * p_h, t_cy + 0.5 * t_h)
    c_w = c_br_x - c_tl_x
    c_h = c_br_y - c_tl_y

    if loss_type == 'giou':
        area_c = c_w * c_h
        giou = iou - (area_c - area_u) * pl.reciprocal(
            jnp.maximum(area_c, 1e-16), approx=True)
        return 1.0 - jnp.clip(giou, -1.0, 1.0)

    # ciou / ciou_log common terms.
    dx = p_cx - t_cx
    dy = p_cy - t_cy
    center_distance = dx * dx + dy * dy
    c2 = c_w * c_w + c_h * c_h
    cd_term = center_distance * pl.reciprocal(c2 + 1e-16, approx=True)

    # atan(t_h/t_w) - atan(p_h/p_w) == atan((t_h*p_w - p_h*t_w)/(t_w*p_w + t_h*p_h))
    # (exact for w,h > 0): 1 arctan + 1 reciprocal instead of 2 arctan + 2 divides.
    num = t_h * p_w - p_h * t_w
    den = t_w * p_w + t_h * p_h
    datan = jnp.arctan(num * pl.reciprocal(den, approx=True))
    v = (4.0 / math.pi ** 2) * datan * datan

    if loss_type == 'ciou':
        alpha = v * pl.reciprocal(1.0 - iou + v + 1e-16, approx=True)
        ciou = iou - cd_term - alpha * v
        return 1.0 - ciou
    elif loss_type == 'ciou_log':
        lam = 1.0
        inter_w = jnp.maximum(w_i, 0.0)
        inter_h = jnp.maximum(h_i, 0.0)
        area_i_lam = (inter_w + lam) * (inter_h + lam) + 1e-16
        area_p_lam = (p_w + lam) * (p_h + lam) + 1e-16
        area_t_lam = (t_w + lam) * (t_h + lam) + 1e-16
        log_area_i = jnp.log(area_i_lam)
        # Reference: logsumexp(log(ap), log(at)) - log(ai) == log(ap + at) - log(ai).
        # Computing it directly in linear space drops 2 exp + 2 log per box.
        log_area_u = jnp.log(area_p_lam + area_t_lam) - log_area_i
        iou_log = log_area_i * pl.reciprocal(log_area_u, approx=True)
        alpha_log = v * pl.reciprocal(1.0 - iou_log + v + 1e-16, approx=True)
        ciou_log = iou_log - cd_term - alpha_log * v
        return 1.0 - ciou_log
    else:
        raise ValueError(f"unknown loss_type: {loss_type}")


def _iou_loss_none_kernel(p_ref, t_ref, o_ref, *, loss_type):
    o_ref[...] = _compute_loss_tile(p_ref, t_ref, loss_type)


def _iou_loss_partial_kernel(p_ref, t_ref, o_ref, *,
                             loss_type, n_boxes, n_padded, tile_rows):
    """Per-tile partial sums: pure-VPU strip add into an (8,128) output block.

    Grid axis is "parallel" (each step writes its own output block), so v7x
    can split the tiles across both TensorCores; the final cross-lane collapse
    of the tiny (grid, 8, 128) buffer happens in XLA.
    """
    i = pl.program_id(0)
    loss = _compute_loss_tile(p_ref, t_ref, loss_type)   # (tile_rows, 128) f32

    def _store_partial(l):
        # (tile_rows, 128) -> (tile_rows//8, 8, 128), sum over the major axis:
        # whole-(8,128)-strip VPU adds, no XLU cross-lane reduce in the loop.
        o_ref[0] = l.reshape(tile_rows // _SUBLANE, _SUBLANE, _LANE).sum(axis=0)

    if n_padded > n_boxes:
        last = pl.num_programs(0) - 1

        @pl.when(i != last)
        def _interior():
            _store_partial(loss)

        @pl.when(i == last)
        def _last_partial():
            # Mask padded lanes only on the (single, possibly partial) last tile.
            base = i * (tile_rows * _LANE)
            row = jax.lax.broadcasted_iota(jnp.int32, loss.shape, 0)
            lane = jax.lax.broadcasted_iota(jnp.int32, loss.shape, 1)
            valid = (base + row * _LANE + lane) < n_boxes
            _store_partial(jnp.where(valid, loss, 0.0))
    else:
        _store_partial(loss)


def iou_loss(pred, target, reduction='none', loss_type='iou', tile_rows=None):
    """JAX/Pallas equivalent of IOUloss.forward(pred, target)."""
    assert pred.shape[0] == target.shape[0]
    p = jnp.asarray(pred, jnp.float32).reshape(-1, 4)
    t = jnp.asarray(target, jnp.float32).reshape(-1, 4)
    n = p.shape[0]

    # ---- tiling: big tiles to amortize per-step overhead, but keep >= ~8
    # grid steps (pipelining / v7x megacore) when tiles can stay >= ~512 rows.
    rows = _round_up(max(pl.cdiv(n, _LANE), 1), _SUBLANE)
    cap = _tile_rows_cap() if tile_rows is None else int(tile_rows)
    target_steps = min(8, max(1, rows // 512))
    tr = min(cap, _round_up(pl.cdiv(rows, target_steps), _SUBLANE))
    tr = min(tr, rows)
    rows = _round_up(rows, tr)                  # tile divides rows exactly
    n_pad = rows * _LANE
    grid = (rows // tr,)

    # SoA relayout: (N,4) -> (4, rows, 128).  Padding with benign unit boxes
    # keeps padded lanes finite (they are sliced/masked away anyway).
    pad_box = jnp.asarray([0.0, 0.0, 1.0, 1.0], dtype=jnp.float32)

    def to_soa(x):
        if n_pad > n:
            x = jnp.concatenate(
                [x, jnp.broadcast_to(pad_box, (n_pad - n, 4))], axis=0)
        return jnp.transpose(x).reshape(4, rows, _LANE)

    p_soa = to_soa(p)
    t_soa = to_soa(t)

    in_specs = [
        pl.BlockSpec((4, tr, _LANE), lambda i: (0, i, 0)),
        pl.BlockSpec((4, tr, _LANE), lambda i: (0, i, 0)),
    ]

    if reduction in ('mean', 'sum'):
        kernel = functools.partial(
            _iou_loss_partial_kernel, loss_type=loss_type,
            n_boxes=n, n_padded=n_pad, tile_rows=tr)
        partial = pl.pallas_call(
            kernel,
            out_shape=jax.ShapeDtypeStruct((grid[0], _SUBLANE, _LANE), jnp.float32),
            grid_spec=pltpu.PrefetchScalarGridSpec(
                num_scalar_prefetch=0,
                grid=grid,
                in_specs=in_specs,
                out_specs=pl.BlockSpec((1, _SUBLANE, _LANE), lambda i: (i, 0, 0)),
            ),
            compiler_params=pltpu.CompilerParams(
                dimension_semantics=("parallel",)),
        )(p_soa, t_soa)
        total = jnp.sum(partial, dtype=jnp.float32)   # tiny epilogue in XLA
        if reduction == 'mean':
            return total / jnp.float32(n)
        return total

    # reduction == 'none' (or anything else, matching the reference fallthrough)
    kernel = functools.partial(_iou_loss_none_kernel, loss_type=loss_type)
    out = pl.pallas_call(
        kernel,
        out_shape=jax.ShapeDtypeStruct((rows, _LANE), jnp.float32),
        grid_spec=pltpu.PrefetchScalarGridSpec(
            num_scalar_prefetch=0,
            grid=grid,
            in_specs=in_specs,
            out_specs=pl.BlockSpec((tr, _LANE), lambda i: (i, 0)),
        ),
        compiler_params=pltpu.CompilerParams(
            dimension_semantics=("parallel",)),
    )(p_soa, t_soa)
    flat = out.reshape(-1)
    if n_pad == n:
        return flat            # no padding: skip the extra [:n] copy
    return flat[:n]


if __name__ == "__main__":
    key = jax.random.PRNGKey(0)
    k1, k2, k3, k4 = jax.random.split(key, 4)

    n_boxes = 8
    # boxes are [cx, cy, w, h] with strictly positive w/h
    pred = jnp.concatenate(
        [jax.random.uniform(k1, (n_boxes, 2), minval=0.0, maxval=16.0),
         jax.random.uniform(k2, (n_boxes, 2), minval=1.0, maxval=8.0)],
        axis=1,
    ).astype(jnp.float32)
    target = jnp.concatenate(
        [jax.random.uniform(k3, (n_boxes, 2), minval=0.0, maxval=16.0),
         jax.random.uniform(k4, (n_boxes, 2), minval=1.0, maxval=8.0)],
        axis=1,
    ).astype(jnp.float32)

    # default module config: reduction='none', loss_type='iou'
    loss = iou_loss(pred, target, reduction='none', loss_type='iou')
    jax.block_until_ready(loss)

    # exercise the other (static) branches once as well
    for lt in ('giou', 'ciou', 'ciou_log'):
        jax.block_until_ready(iou_loss(pred, target, reduction='mean', loss_type=lt))
    jax.block_until_ready(iou_loss(pred, target, reduction='sum', loss_type='iou'))

    print("KERNEL_OK")
</pallas_src>

<mosaic_0001>
module attributes {stable_mosaic.version = 11 : i64} {
  func.func @_iou_loss_none_kernel(%arg0: i32, %arg1: memref<4x8x128xf32, #tpu.memory_space<vmem>>, %arg2: memref<4x8x128xf32, #tpu.memory_space<vmem>>, %arg3: memref<8x128xf32, #tpu.memory_space<vmem>>) attributes {dimension_semantics = [#tpu.dimension_semantics<parallel>], iteration_bounds = array<i64: 1>, scalar_prefetch = 0 : i64, scratch_operands = 0 : i64, tpu.core_type = #tpu.core_type<tc>, window_params = [{transform_indices = @transform_0, window_bounds = array<i64: 4, 8, 128>}, {transform_indices = @transform_1, window_bounds = array<i64: 4, 8, 128>}, {transform_indices = @transform_2, window_bounds = array<i64: 8, 128>}]} {
    %c0 = arith.constant 0 : index
    %c0_0 = arith.constant 0 : index
    %c0_1 = arith.constant 0 : index
    %0 = vector.load %arg1[%c0, %c0_0, %c0_1] : memref<4x8x128xf32, #tpu.memory_space<vmem>>, vector<1x8x128xf32>
    %1 = vector.shape_cast %0 : vector<1x8x128xf32> to vector<8x128xf32>
    %c1 = arith.constant 1 : index
    %c0_2 = arith.constant 0 : index
    %c0_3 = arith.constant 0 : index
    %2 = vector.load %arg1[%c1, %c0_2, %c0_3] : memref<4x8x128xf32, #tpu.memory_space<vmem>>, vector<1x8x128xf32>
    %3 = vector.shape_cast %2 : vector<1x8x128xf32> to vector<8x128xf32>
    %c2 = arith.constant 2 : index
    %c0_4 = arith.constant 0 : index
    %c0_5 = arith.constant 0 : index
    %4 = vector.load %arg1[%c2, %c0_4, %c0_5] : memref<4x8x128xf32, #tpu.memory_space<vmem>>, vector<1x8x128xf32>
    %5 = vector.shape_cast %4 : vector<1x8x128xf32> to vector<8x128xf32>
    %c3 = arith.constant 3 : index
    %c0_6 = arith.constant 0 : index
    %c0_7 = arith.constant 0 : index
    %6 = vector.load %arg1[%c3, %c0_6, %c0_7] : memref<4x8x128xf32, #tpu.memory_space<vmem>>, vector<1x8x128xf32>
    %7 = vector.shape_cast %6 : vector<1x8x128xf32> to vector<8x128xf32>
    %c0_8 = arith.constant 0 : index
    %c0_9 = arith.constant 0 : index
    %c0_10 = arith.constant 0 : index
    %8 = vector.load %arg2[%c0_8, %c0_9, %c0_10] : memref<4x8x128xf32, #tpu.memory_space<vmem>>, vector<1x8x128xf32>
    %9 = vector.shape_cast %8 : vector<1x8x128xf32> to vector<8x128xf32>
    %c1_11 = arith.constant 1 : index
    %c0_12 = arith.constant 0 : index
    %c0_13 = arith.constant 0 : index
    %10 = vector.load %arg2[%c1_11, %c0_12, %c0_13] : memref<4x8x128xf32, #tpu.memory_space<vmem>>, vector<1x8x128xf32>
    %11 = vector.shape_cast %10 : vector<1x8x128xf32> to vector<8x128xf32>
    %c2_14 = arith.constant 2 : index
    %c0_15 = arith.constant 0 : index
    %c0_16 = arith.constant 0 : index
    %12 = vector.load %arg2[%c2_14, %c0_15, %c0_16] : memref<4x8x128xf32, #tpu.memory_space<vmem>>, vector<1x8x128xf32>
    %13 = vector.shape_cast %12 : vector<1x8x128xf32> to vector<8x128xf32>
    %c3_17 = arith.constant 3 : index
    %c0_18 = arith.constant 0 : index
    %c0_19 = arith.constant 0 : index
    %14 = vector.load %arg2[%c3_17, %c0_18, %c0_19] : memref<4x8x128xf32, #tpu.memory_space<vmem>>, vector<1x8x128xf32>
    %15 = vector.shape_cast %14 : vector<1x8x128xf32> to vector<8x128xf32>
    %cst = arith.constant 5.000000e-01 : f32
    %16 = vector.broadcast %cst : f32 to vector<8x128xf32>
    %17 = arith.mulf %16, %5 : vector<8x128xf32>
    %18 = arith.subf %1, %17 : vector<8x128xf32>
    %cst_20 = arith.constant 5.000000e-01 : f32
    %19 = vector.broadcast %cst_20 : f32 to vector<8x128xf32>
    %20 = arith.mulf %19, %13 : vector<8x128xf32>
    %21 = arith.subf %9, %20 : vector<8x128xf32>
    %22 = arith.maximumf %18, %21 : vector<8x128xf32>
    %cst_21 = arith.constant 5.000000e-01 : f32
    %23 = vector.broadcast %cst_21 : f32 to vector<8x128xf32>
    %24 = arith.mulf %23, %7 : vector<8x128xf32>
    %25 = arith.subf %3, %24 : vector<8x128xf32>
    %cst_22 = arith.constant 5.000000e-01 : f32
    %26 = vector.broadcast %cst_22 : f32 to vector<8x128xf32>
    %27 = arith.mulf %26, %15 : vector<8x128xf32>
    %28 = arith.subf %11, %27 : vector<8x128xf32>
    %29 = arith.maximumf %25, %28 : vector<8x128xf32>
    %cst_23 = arith.constant 5.000000e-01 : f32
    %30 = vector.broadcast %cst_23 : f32 to vector<8x128xf32>
    %31 = arith.mulf %30, %5 : vector<8x128xf32>
    %32 = arith.addf %1, %31 : vector<8x128xf32>
    %cst_24 = arith.constant 5.000000e-01 : f32
    %33 = vector.broadcast %cst_24 : f32 to vector<8x128xf32>
    %34 = arith.mulf %33, %13 : vector<8x128xf32>
    %35 = arith.addf %9, %34 : vector<8x128xf32>
    %36 = arith.minimumf %32, %35 : vector<8x128xf32>
    %cst_25 = arith.constant 5.000000e-01 : f32
    %37 = vector.broadcast %cst_25 : f32 to vector<8x128xf32>
    %38 = arith.mulf %37, %7 : vector<8x128xf32>
    %39 = arith.addf %3, %38 : vector<8x128xf32>
    %cst_26 = arith.constant 5.000000e-01 : f32
    %40 = vector.broadcast %cst_26 : f32 to vector<8x128xf32>
    %41 = arith.mulf %40, %15 : vector<8x128xf32>
    %42 = arith.addf %11, %41 : vector<8x128xf32>
    %43 = arith.minimumf %39, %42 : vector<8x128xf32>
    %44 = arith.mulf %5, %7 : vector<8x128xf32>
    %45 = arith.mulf %13, %15 : vector<8x128xf32>
    %46 = arith.cmpf olt, %22, %36 : vector<8x128xf32>
    %47 = arith.cmpf olt, %29, %43 : vector<8x128xf32>
    %48 = arith.andi %46, %47 : vector<8x128xi1>
    %49 = arith.extui %48 : vector<8x128xi1> to vector<8x128xi32>
    %50 = arith.sitofp %49 : vector<8x128xi32> to vector<8x128xf32>
    %51 = arith.subf %36, %22 : vector<8x128xf32>
    %52 = arith.subf %43, %29 : vector<8x128xf32>
    %53 = arith.mulf %51, %52 : vector<8x128xf32>
    %54 = arith.mulf %53, %50 : vector<8x128xf32>
    %55 = arith.addf %44, %45 : vector<8x128xf32>
    %56 = arith.subf %55, %54 : vector<8x128xf32>
    %cst_27 = arith.constant 1.000000e-16 : f32
    %57 = vector.broadcast %cst_27 : f32 to vector<8x128xf32>
    %58 = arith.addf %56, %57 : vector<8x128xf32>
    %59 = tpu.reciprocal %58 {approx = true} : vector<8x128xf32> -> vector<8x128xf32>
    %60 = arith.mulf %54, %59 : vector<8x128xf32>
    %61 = arith.mulf %60, %60 : vector<8x128xf32>
    %cst_28 = arith.constant 1.000000e+00 : f32
    %62 = vector.broadcast %cst_28 : f32 to vector<8x128xf32>
    %63 = arith.subf %62, %61 : vector<8x128xf32>
    %c0_29 = arith.constant 0 : index
    %c0_30 = arith.constant 0 : index
    %64 = vector.load %arg3[%c0_29, %c0_30] : memref<8x128xf32, #tpu.memory_space<vmem>>, vector<8x128xf32>
    tpu.vector_store %arg3[%c0_29, %c0_30], %63 {strides = array<i32>} : memref<8x128xf32, #tpu.memory_space<vmem>>, vector<8x128xf32>,
    return
  }
  func.func @transform_0(%arg0: i32) -> (i32, i32, i32) {
    %c0_i32 = arith.constant 0 : i32
    %c0_i32_0 = arith.constant 0 : i32
    %c0_i32_1 = arith.constant 0 : i32
    return %c0_i32, %arg0, %c0_i32_0 : i32, i32, i32
  }
  func.func @transform_1(%arg0: i32) -> (i32, i32, i32) {
    %c0_i32 = arith.constant 0 : i32
    %c0_i32_0 = arith.constant 0 : i32
    %c0_i32_1 = arith.constant 0 : i32
    return %c0_i32, %arg0, %c0_i32_0 : i32, i32, i32
  }
  func.func @transform_2(%arg0: i32) -> (i32, i32) {
    %c0_i32 = arith.constant 0 : i32
    %c0_i32_0 = arith.constant 0 : i32
    return %arg0, %c0_i32 : i32, i32
  }
}

</mosaic_0001>

<llo_original>
// kernel: tpu_custom_call.1
$region0: #{tpu_custom_call.1}
  #allocation0 [shape = 'u32[]', space=smem, size = 0x4, offset = 0x4, fixed_abs, tag = 'smem constant byte address 0x4 - core index']
  #allocation1 [shape = 'u32[144,128]{1,0:T(1,128)}', space=vmem, size = 0x12000, scoped, tag = 'internal scratch']
  %s0 = inlined_call_operand.hbm [shape: f32[4,8,128], index: 0, kind: input, shape index: {}]
  %s1 = inlined_call_operand.hbm [shape: f32[4,8,128], index: 1, kind: input, shape index: {}]
  %s2 = inlined_call_operand.hbm [shape: f32[8,128], index: 2, kind: output, shape index: {}]
  %s3 = sld [smem:[#allocation0]]
  $region26: #{tpu_custom_call.1} parent=0
    _
  %s5 = ssub.s32 1, %s3
  %s6 = scalar_select 0, %s5, %s3
  $region1: #{tpu_custom_call.1} parent=0
    #allocation2 [shape = 'u8[16384]{0}', space=vmem, size = 0x4000, scoped, tag = 'input window, operand 0, single buffered']
    #allocation3 [shape = 's32[1]{0}', space=sflag, size = 0x4, scoped, tag = 'scoped memory for tpu_custom_call.1']
    #allocation4 [shape = 's32[1]{0}', space=sflag, size = 0x4, scoped, tag = 'scoped memory for tpu_custom_call.1']
    #allocation5 [shape = 'u8[16384]{0}', space=vmem, size = 0x4000, scoped, tag = 'input window, operand 1, single buffered']
    #allocation6 [shape = 's32[1]{0}', space=sflag, size = 0x4, scoped, tag = 'scoped memory for tpu_custom_call.1']
    #allocation7 [shape = 'u8[4096]{0}', space=vmem, size = 0x1000, scoped, tag = 'output window, operand 0, single buffered']
    %7 = vsyncpa [#allocation3], 0
    %8 = vsyncpa [#allocation6], 0
    %9 = vsyncpa [#allocation4], 0
    // Predicated region
    $region2: #{tpu_custom_call.1} parent=1 // pred_check
      _
    $region3: #{tpu_custom_call.1} parent=1 // pred_check_branch
      %11 = sbr.rel (0) target = $region5
    $region4: #{tpu_custom_call.1} parent=1 // pred_region
      %s13 = ssub.s32 512, 512
      %14 = vsyncadd [#allocation3], %s13
      %s15 = sshll.u32 [#allocation2], 4
      %s16 = int_to_ptr.vmem [resolvable:$true] %s15
      %21 = dma.hbm_to_vmem [thread:$0]  %s0, 512, %s16, [#allocation3], 128, 128, 8
    $region5: #{tpu_custom_call.1} parent=1 // pred_fallthru
      _
    // Predicated region
    $region6: #{tpu_custom_call.1} parent=1 // pred_check
      _
    $region7: #{tpu_custom_call.1} parent=1 // pred_check_branch
      %23 = sbr.rel (0) target = $region9
    $region8: #{tpu_custom_call.1} parent=1 // pred_region
      %s25 = ssub.s32 512, 512
      %26 = vsyncadd [#allocation6], %s25
      %s27 = sshll.u32 [#allocation5], 4
      %s28 = int_to_ptr.vmem [resolvable:$true] %s27
      %33 = dma.hbm_to_vmem [thread:$0]  %s1, 512, %s28, [#allocation6], 128, 128, 8
    $region9: #{tpu_custom_call.1} parent=1 // pred_fallthru
      _
    // Predicated region
    $region10: #{tpu_custom_call.1} parent=1 // pred_check
      _
    $region11: #{tpu_custom_call.1} parent=1 // pred_check_branch
      %35 = sbr.rel (0) target = $region13
    $region12: #{tpu_custom_call.1} parent=1 // pred_region
      %36 = dma.done [#allocation3], 512
    $region13: #{tpu_custom_call.1} parent=1 // pred_fallthru
      _
    // Predicated region
    $region14: #{tpu_custom_call.1} parent=1 // pred_check
      _
    $region15: #{tpu_custom_call.1} parent=1 // pred_check_branch
      %38 = sbr.rel (0) target = $region17
    $region16: #{tpu_custom_call.1} parent=1 // pred_region
      %39 = dma.done [#allocation6], 512
    $region17: #{tpu_custom_call.1} parent=1 // pred_fallthru
      _
    %v40 = vld [vmem:[#allocation2] sm:$0xff]
    %s41 = scalar_lea.vmem [#allocation2], 8
    %v42 = vld [vmem:[%s41] sm:$0xff]
    %s43 = scalar_lea.vmem [#allocation2], 16
    %v44 = vld [vmem:[%s43] sm:$0xff]
    %s45 = scalar_lea.vmem [#allocation2], 24
    %v46 = vld [vmem:[%s45] sm:$0xff]
    %v47 = vld [vmem:[#allocation5] sm:$0xff]
    %s48 = scalar_lea.vmem [#allocation5], 8
    %v49 = vld [vmem:[%s48] sm:$0xff]
    %s50 = scalar_lea.vmem [#allocation5], 16
    %v51 = vld [vmem:[%s50] sm:$0xff]
    %s52 = scalar_lea.vmem [#allocation5], 24
    %v53 = vld [vmem:[%s52] sm:$0xff]
    %v54 = vmul.f32 %v44, 0.5
    %v55 = vsub.f32 %v40, %v54
    %v56 = vmul.f32 %v51, 0.5
    %v57 = vsub.f32 %v47, %v56
    %v58 = vmax.f32 %v55, %v57
    %v59 = vmul.f32 %v46, 0.5
    %v60 = vsub.f32 %v42, %v59
    %v61 = vmul.f32 %v53, 0.5
    %v62 = vsub.f32 %v49, %v61
    %v63 = vmax.f32 %v60, %v62
    %v64 = vadd.f32 %v40, %v54
    %v65 = vadd.f32 %v47, %v56
    %v66 = vmin.f32 %v64, %v65
    %v67 = vadd.f32 %v42, %v59
    %v68 = vadd.f32 %v49, %v61
    %v69 = vmin.f32 %v67, %v68
    %v70 = vmul.f32 %v44, %v46
    %v71 = vmul.f32 %v51, %v53
    %vm72 = vcmp.lt.f32.partialorder %v58, %v66
    %vm73 = vcmp.lt.f32.partialorder %v63, %v69
    %vm74 = vmand %vm72, %vm73
    %v75 = vsel %vm74, 1, 0
    %v76 = vcvt.s32.f32 %v75
    %v77 = vsub.f32 %v66, %v58
    %v78 = vsub.f32 %v69, %v63
    %v79 = vmul.f32 %v77, %v78
    %v80 = vmul.f32 %v79, %v76
    %v81 = vadd.f32 %v70, %v71
    %v82 = vsub.f32 %v81, %v80
    %v83 = vadd.f32 %v82, 1e-16
    %v84 = vrcp.pop %v83
    %v85 = vmul.f32 %v80, %v84
    %v86 = vmul.f32 %v85, %v85
    %v87 = vsub.f32 1.0, %v86
    %88 = vst [vmem:[#allocation7] sm:$0xff] %v87
    // Predicated region
    $region18: #{tpu_custom_call.1} parent=1 // pred_check
      _
    $region19: #{tpu_custom_call.1} parent=1 // pred_check_branch
      %90 = sbr.rel (0) target = $region21
    $region20: #{tpu_custom_call.1} parent=1 // pred_region
      %s92 = ssub.s32 128, 128
      %93 = vsyncadd [#allocation4], %s92
      %s95 = sshll.u32 [#allocation7], 4
      %s96 = int_to_ptr.vmem [resolvable:$true] %s95
      %98 = dma.vmem_to_hbm [thread:$0]  %s96, 128, %s2, [#allocation4]
    $region21: #{tpu_custom_call.1} parent=1 // pred_fallthru
      _
    // Predicated region
    $region22: #{tpu_custom_call.1} parent=1 // pred_check
      _
    $region23: #{tpu_custom_call.1} parent=1 // pred_check_branch
      %100 = sbr.rel (0) target = $region25
    $region24: #{tpu_custom_call.1} parent=1 // pred_region
      %101 = dma.done [#allocation4], 128
    $region25: #{tpu_custom_call.1} parent=1 // pred_fallthru
      _
    %102 = vsyncpa [#allocation3], 1
    %103 = vsyncpa [#allocation6], 1
    %104 = vsyncpa [#allocation4], 1

</llo_original>
